<compile_context>
chip_gen: v7x
topology: tpu7x:2x2x1
jax: 0.10.0
libtpu: 0.0.40
codegen_flags: <defaults>
</compile_context>

<pallas_src>
import math

import jax
import jax.numpy as jnp
import numpy as np
from jax.experimental import pallas as pl
from jax.experimental.pallas import tpu as pltpu

HIDDEN = 128
LANE = 128
SUBLANE = 8


def _round_up(x, m):
    return (x + m - 1) // m * m


def _vmem_capacity_bytes():
    try:
        return int(pltpu.get_tpu_info().vmem_capacity_bytes)
    except Exception:
        return 64 * 1024 * 1024  # conservative default: v7x per-TensorCore VMEM


def iqn_kernel(obs_ref, rand_ref,
               w1_ref, b1_ref, w2_ref, b2_ref,
               wf1_ref, bf1_ref, wf2_ref, bf2_ref,
               out_ref):
    """One batch tile: obs (TB, D_pad) -> out (TB*S_pad, A_pad)."""
    wdt = w1_ref.dtype  # matmul-input dtype (bf16 default); accumulation is f32

    # ---- feature MLP: relu(obs @ W1 + b1) -> relu(. @ W2 + b2) ----
    x = jnp.dot(obs_ref[...], w1_ref[...], preferred_element_type=jnp.float32)
    x = jnp.maximum(x + b1_ref[...], 0.0)                               # (TB, H) f32
    x = jnp.dot(x.astype(wdt), w2_ref[...], preferred_element_type=jnp.float32)
    x = jnp.maximum(x + b2_ref[...], 0.0)                               # (TB, H) f32

    # ---- combine with the precomputed quantile embedding -> (TB*S_pad, H) ----
    rand_feat = rand_ref[...]                                           # (S_pad, H) f32
    TB, H = x.shape
    S_pad = rand_feat.shape[0]
    # S_pad % 8 == 0 -> this reshape is a free, tile-aligned leading-dim merge.
    h = (x[:, None, :] * rand_feat[None, :, :]).reshape(TB * S_pad, H)

    # ---- head: relu(fc1) -> fc2 (A padded to 128 lanes -> unmasked stores) ----
    h = jnp.dot(h.astype(wdt), wf1_ref[...], preferred_element_type=jnp.float32)
    h = jnp.maximum(h + bf1_ref[...], 0.0)                              # (TB*S_pad, H)
    v = jnp.dot(h.astype(wdt), wf2_ref[...], preferred_element_type=jnp.float32)
    out_ref[...] = (v + bf2_ref[...]).astype(out_ref.dtype)             # (TB*S_pad, A_pad)


def init_params(key, obs_dim, action_dim):
    """Deterministic init mimicking torch.nn.Linear defaults (U(-1/sqrt(fan_in), ..))."""
    ks = jax.random.split(key, 10)

    def lin(kw, kb, fan_in, fan_out):
        bound = 1.0 / math.sqrt(fan_in)
        w = jax.random.uniform(kw, (fan_in, fan_out), jnp.float32, -bound, bound)
        b = jax.random.uniform(kb, (1, fan_out), jnp.float32, -bound, bound)
        return w, b

    w1, b1 = lin(ks[0], ks[1], obs_dim, HIDDEN)
    w2, b2 = lin(ks[2], ks[3], HIDDEN, HIDDEN)
    # phi = Linear(1, 128, bias=False): torch weight (128, 1); stored transposed (1, 128)
    phiw = jax.random.uniform(ks[4], (1, HIDDEN), jnp.float32, -1.0, 1.0)  # fan_in = 1
    phib = jnp.zeros((1, HIDDEN), jnp.float32)      # nn.Parameter(torch.zeros(128))
    wf1, bf1 = lin(ks[5], ks[6], HIDDEN, HIDDEN)
    wf2, bf2 = lin(ks[7], ks[8], HIDDEN, action_dim)
    return dict(w1=w1, b1=b1, w2=w2, b2=b2, phiw=phiw, phib=phib,
                wf1=wf1, bf1=bf1, wf2=wf2, bf2=bf2)


def iqn_forward(params, observation, sample_num, tau_key, *,
                compute_dtype=jnp.bfloat16, out_dtype=jnp.bfloat16,
                target_rows=8192):
    """Equivalent of net.forward(observation, sample_num); returns (value, tau)."""
    B, obs_dim = observation.shape
    H = HIDDEN
    A = params["wf2"].shape[1]
    S = int(sample_num)

    # tau = torch.rand(sample_num, 1)  (stateless JAX RNG in the wrapper)
    tau = jax.random.uniform(tau_key, (S, 1), jnp.float32)

    # ---- quantile embedding (depends only on tau) hoisted out of the kernel ----
    quants = jnp.arange(S, dtype=jnp.float32)[None, :]                     # (1, S)
    cos_t = jnp.cos(quants * tau * jnp.float32(np.pi))                     # (S, S)
    phi = cos_t[..., None] * params["phiw"][0][None, None, :]              # (S, S, H)
    rand_feat = jnp.maximum(phi.mean(axis=1) + params["phib"], 0.0)        # (S, H) f32

    # ---- lane / sublane friendly padding (one-time, wrapper side) ----
    D_pad = _round_up(max(obs_dim, LANE), LANE)
    A_pad = _round_up(max(A, LANE), LANE)
    S_pad = _round_up(max(S, SUBLANE), SUBLANE)

    f32 = jnp.float32
    w1 = jnp.pad(params["w1"], ((0, D_pad - obs_dim), (0, 0))).astype(compute_dtype)
    w2 = params["w2"].astype(compute_dtype)
    wf1 = params["wf1"].astype(compute_dtype)
    wf2 = jnp.pad(params["wf2"], ((0, 0), (0, A_pad - A))).astype(compute_dtype)
    b1, b2, bf1 = params["b1"], params["b2"], params["bf1"]                # f32 (1, H)
    bf2 = jnp.pad(params["bf2"], ((0, 0), (0, A_pad - A)))                 # f32 (1, A_pad)
    rand_p = jnp.pad(rand_feat.astype(f32), ((0, S_pad - S), (0, 0)))      # (S_pad, H) f32

    resident_arrays = (rand_p, w1, b1, w2, b2, wf1, bf1, wf2, bf2)
    weight_bytes = sum(int(np.prod(a.shape)) * a.dtype.itemsize for a in resident_arrays)
    c_item = jnp.dtype(compute_dtype).itemsize
    o_item = jnp.dtype(out_dtype).itemsize

    def est_vmem(tb):
        rows = tb * S_pad
        return (weight_bytes
                + 2 * tb * D_pad * c_item          # obs tile, double-buffered
                + 2 * rows * A_pad * o_item        # out tile, double-buffered
                + 4 * rows * H * 4                 # live f32 head intermediates
                + 4 * tb * H * 4)                  # live f32 feature intermediates

    # ---- batch tile: big tiles amortize grid overhead & feed the MXU a long M ----
    vmem_budget = int(_vmem_capacity_bytes() * 0.75)
    B_ceil = _round_up(B, SUBLANE)
    TB = max(SUBLANE, (target_rows // S_pad) // SUBLANE * SUBLANE)
    TB = min(TB, B_ceil)                             # don't over-pad tiny batches
    if B_ceil >= 2 * SUBLANE:                        # >=2 tiles -> both v7x TCs busy
        TB = min(TB, _round_up(pl.cdiv(B_ceil, 2), SUBLANE))
    while TB > SUBLANE and est_vmem(TB) > vmem_budget:
        TB = max(SUBLANE, (TB // 2) // SUBLANE * SUBLANE)
    B_pad = _round_up(B, TB)
    num_tiles = B_pad // TB

    obs_p = jnp.pad(observation.astype(compute_dtype),
                    ((0, B_pad - B), (0, D_pad - obs_dim)))

    # Full-array blocks with constant index_map -> weights/rand_feat stay VMEM-resident.
    def resident(shape):
        return pl.BlockSpec(shape, lambda i, _n=len(shape): (0,) * _n)

    in_specs = [
        pl.BlockSpec((TB, D_pad), lambda i: (i, 0)),     # obs tile
        resident((S_pad, H)),                            # rand_feat
        resident((D_pad, H)), resident((1, H)),          # w1, b1
        resident((H, H)), resident((1, H)),              # w2, b2
        resident((H, H)), resident((1, H)),              # wf1, bf1
        resident((H, A_pad)), resident((1, A_pad)),      # wf2, bf2
    ]
    # TODO(synk): if v5e profiles show exposed output writeback, add
    # pipeline_mode=pl.Buffered(3) to this out_spec.
    out_spec = pl.BlockSpec((TB * S_pad, A_pad), lambda i: (i, 0))

    flops = (2 * B_pad * H * (D_pad + H)                 # feature MLP
             + 2 * B_pad * S_pad * H * (H + A_pad))      # per-quantile head
    cost = pl.CostEstimate(
        flops=int(flops),
        transcendentals=0,
        bytes_accessed=int(obs_p.size * c_item
                           + B_pad * S_pad * A_pad * o_item
                           + weight_bytes))

    vmem_limit = int(min(max(int(1.5 * est_vmem(TB)), 32 * 1024 * 1024), vmem_budget))

    out = pl.pallas_call(
        iqn_kernel,
        out_shape=jax.ShapeDtypeStruct((B_pad * S_pad, A_pad), out_dtype),
        grid_spec=pltpu.PrefetchScalarGridSpec(
            num_scalar_prefetch=0,
            grid=(num_tiles,),
            in_specs=in_specs,
            out_specs=out_spec),
        compiler_params=pltpu.CompilerParams(
            dimension_semantics=("parallel",),
            vmem_limit_bytes=vmem_limit),
        cost_estimate=cost,
    )(obs_p, rand_p, w1, b1, w2, b2, wf1, bf1, wf2, bf2)

    # (B_pad*S_pad, A_pad) -> (B, S, A) -> (B, A, S)  (== value.transpose(1, 2))
    value = out.reshape(B_pad, S_pad, A_pad)[:B, :S, :A].transpose(0, 2, 1)
    return value.astype(jnp.float32), tau


def reference_forward(params, observation, tau):
    """Pure-JAX reference (direct phi/mean form) for a sanity check."""
    x = jnp.maximum(observation @ params["w1"] + params["b1"], 0.0)
    x = jnp.maximum(x @ params["w2"] + params["b2"], 0.0)
    S = tau.shape[0]
    quants = jnp.arange(S, dtype=jnp.float32)
    cos_t = jnp.cos(quants[None, :] * tau * np.pi)[..., None]       # (S, S, 1)
    phi = cos_t * params["phiw"][0]                                 # (S, S, 128)
    rand_feat = jnp.maximum(phi.mean(1) + params["phib"], 0.0)      # (S, 128)
    h = x[:, None, :] * rand_feat[None, :, :]
    h = jnp.maximum(h @ params["wf1"] + params["bf1"], 0.0)
    v = h @ params["wf2"] + params["bf2"]                           # (B, S, A)
    return jnp.transpose(v, (0, 2, 1))


if __name__ == "__main__":
    key = jax.random.PRNGKey(0)
    k_param, k_obs, k_tau = jax.random.split(key, 3)

    B, OBS_DIM, ACTION_DIM, SAMPLE_NUM = 2, 16, 4, 8
    params = init_params(k_param, OBS_DIM, ACTION_DIM)
    observation = jax.random.normal(k_obs, (B, OBS_DIM), jnp.float32)

    # f32 path: strict check against the pure-JAX reference.
    value_f32, tau = iqn_forward(params, observation, SAMPLE_NUM, k_tau,
                                 compute_dtype=jnp.float32, out_dtype=jnp.float32)
    value_f32 = jax.block_until_ready(value_f32)
    ref = reference_forward(params, observation, tau)
    np.testing.assert_allclose(np.asarray(value_f32), np.asarray(ref),
                               rtol=1e-5, atol=1e-5)
    assert value_f32.shape == (B, ACTION_DIM, SAMPLE_NUM) and tau.shape == (SAMPLE_NUM, 1)

    # Default fast path (bf16 matmul inputs + bf16 output slab, f32 accumulation):
    # loose check (RL inference tolerance).
    value, _ = iqn_forward(params, observation, SAMPLE_NUM, k_tau)
    value = jax.block_until_ready(value)
    assert value.shape == (B, ACTION_DIM, SAMPLE_NUM)
    assert bool(jnp.all(jnp.isfinite(value)))
    np.testing.assert_allclose(np.asarray(value), np.asarray(ref),
                               rtol=1e-1, atol=1e-1)

    print("KERNEL_OK")
</pallas_src>

<mosaic_0001>
module attributes {stable_mosaic.version = 11 : i64} {
  func.func @iqn_kernel(%arg0: i32, %arg1: memref<8x128xf32, #tpu.memory_space<vmem>>, %arg2: memref<8x128xf32, #tpu.memory_space<vmem>>, %arg3: memref<128x128xf32, #tpu.memory_space<vmem>>, %arg4: memref<1x128xf32, #tpu.memory_space<vmem>>, %arg5: memref<128x128xf32, #tpu.memory_space<vmem>>, %arg6: memref<1x128xf32, #tpu.memory_space<vmem>>, %arg7: memref<128x128xf32, #tpu.memory_space<vmem>>, %arg8: memref<1x128xf32, #tpu.memory_space<vmem>>, %arg9: memref<128x128xf32, #tpu.memory_space<vmem>>, %arg10: memref<1x128xf32, #tpu.memory_space<vmem>>, %arg11: memref<64x128xf32, #tpu.memory_space<vmem>>) attributes {dimension_semantics = [#tpu.dimension_semantics<parallel>], iteration_bounds = array<i64: 1>, scalar_prefetch = 0 : i64, scratch_operands = 0 : i64, tpu.core_type = #tpu.core_type<tc>, window_params = [{transform_indices = @transform_0, window_bounds = array<i64: 8, 128>}, {pipeline_mode = #tpu.pipeline_mode<synchronous>, transform_indices = @transform_1, window_bounds = array<i64: 8, 128>}, {pipeline_mode = #tpu.pipeline_mode<synchronous>, transform_indices = @transform_2, window_bounds = array<i64: 128, 128>}, {pipeline_mode = #tpu.pipeline_mode<synchronous>, transform_indices = @transform_3, window_bounds = array<i64: 1, 128>}, {pipeline_mode = #tpu.pipeline_mode<synchronous>, transform_indices = @transform_4, window_bounds = array<i64: 128, 128>}, {pipeline_mode = #tpu.pipeline_mode<synchronous>, transform_indices = @transform_5, window_bounds = array<i64: 1, 128>}, {pipeline_mode = #tpu.pipeline_mode<synchronous>, transform_indices = @transform_6, window_bounds = array<i64: 128, 128>}, {pipeline_mode = #tpu.pipeline_mode<synchronous>, transform_indices = @transform_7, window_bounds = array<i64: 1, 128>}, {pipeline_mode = #tpu.pipeline_mode<synchronous>, transform_indices = @transform_8, window_bounds = array<i64: 128, 128>}, {pipeline_mode = #tpu.pipeline_mode<synchronous>, transform_indices = @transform_9, window_bounds = array<i64: 1, 128>}, {transform_indices = @transform_10, window_bounds = array<i64: 64, 128>}]} {
    %c0 = arith.constant 0 : index
    %c0_0 = arith.constant 0 : index
    %0 = vector.load %arg1[%c0, %c0_0] : memref<8x128xf32, #tpu.memory_space<vmem>>, vector<8x128xf32>
    %c0_1 = arith.constant 0 : index
    %c0_2 = arith.constant 0 : index
    %1 = vector.load %arg3[%c0_1, %c0_2] : memref<128x128xf32, #tpu.memory_space<vmem>>, vector<128x128xf32>
    %cst = arith.constant dense<0.000000e+00> : vector<8x128xf32>
    %2 = tpu.matmul %0, %1, %cst {dimension_numbers = #tpu.dot_dimension_numbers<[1], [0], [0], [1], [0, 0, 1, 1], [], []>} : vector<8x128xf32>, vector<128x128xf32>, vector<8x128xf32> -> vector<8x128xf32>
    %c0_3 = arith.constant 0 : index
    %c0_4 = arith.constant 0 : index
    %3 = vector.load %arg4[%c0_3, %c0_4] : memref<1x128xf32, #tpu.memory_space<vmem>>, vector<1x128xf32>
    %4 = vector.broadcast %3 : vector<1x128xf32> to vector<8x128xf32>
    %5 = arith.addf %2, %4 : vector<8x128xf32>
    %cst_5 = arith.constant 0.000000e+00 : f32
    %6 = vector.broadcast %cst_5 : f32 to vector<8x128xf32>
    %7 = arith.maximumf %5, %6 : vector<8x128xf32>
    %c0_6 = arith.constant 0 : index
    %c0_7 = arith.constant 0 : index
    %8 = vector.load %arg5[%c0_6, %c0_7] : memref<128x128xf32, #tpu.memory_space<vmem>>, vector<128x128xf32>
    %cst_8 = arith.constant dense<0.000000e+00> : vector<8x128xf32>
    %9 = tpu.matmul %7, %8, %cst_8 {dimension_numbers = #tpu.dot_dimension_numbers<[1], [0], [0], [1], [0, 0, 1, 1], [], []>} : vector<8x128xf32>, vector<128x128xf32>, vector<8x128xf32> -> vector<8x128xf32>
    %c0_9 = arith.constant 0 : index
    %c0_10 = arith.constant 0 : index
    %10 = vector.load %arg6[%c0_9, %c0_10] : memref<1x128xf32, #tpu.memory_space<vmem>>, vector<1x128xf32>
    %11 = vector.broadcast %10 : vector<1x128xf32> to vector<8x128xf32>
    %12 = arith.addf %9, %11 : vector<8x128xf32>
    %cst_11 = arith.constant 0.000000e+00 : f32
    %13 = vector.broadcast %cst_11 : f32 to vector<8x128xf32>
    %14 = arith.maximumf %12, %13 : vector<8x128xf32>
    %c0_12 = arith.constant 0 : index
    %c0_13 = arith.constant 0 : index
    %15 = vector.load %arg2[%c0_12, %c0_13] : memref<8x128xf32, #tpu.memory_space<vmem>>, vector<8x128xf32>
    %16 = vector.shape_cast %14 : vector<8x128xf32> to vector<8x1x128xf32>
    %17 = vector.shape_cast %15 : vector<8x128xf32> to vector<1x8x128xf32>
    %18 = vector.broadcast %16 : vector<8x1x128xf32> to vector<8x8x128xf32>
    %19 = vector.broadcast %17 : vector<1x8x128xf32> to vector<8x8x128xf32>
    %20 = arith.mulf %18, %19 : vector<8x8x128xf32>
    %21 = vector.shape_cast %20 : vector<8x8x128xf32> to vector<64x128xf32>
    %c0_14 = arith.constant 0 : index
    %c0_15 = arith.constant 0 : index
    %22 = vector.load %arg7[%c0_14, %c0_15] : memref<128x128xf32, #tpu.memory_space<vmem>>, vector<128x128xf32>
    %cst_16 = arith.constant dense<0.000000e+00> : vector<64x128xf32>
    %23 = tpu.matmul %21, %22, %cst_16 {dimension_numbers = #tpu.dot_dimension_numbers<[1], [0], [0], [1], [0, 0, 1, 1], [], []>} : vector<64x128xf32>, vector<128x128xf32>, vector<64x128xf32> -> vector<64x128xf32>
    %c0_17 = arith.constant 0 : index
    %c0_18 = arith.constant 0 : index
    %24 = vector.load %arg8[%c0_17, %c0_18] : memref<1x128xf32, #tpu.memory_space<vmem>>, vector<1x128xf32>
    %25 = vector.broadcast %24 : vector<1x128xf32> to vector<64x128xf32>
    %26 = arith.addf %23, %25 : vector<64x128xf32>
    %cst_19 = arith.constant 0.000000e+00 : f32
    %27 = vector.broadcast %cst_19 : f32 to vector<64x128xf32>
    %28 = arith.maximumf %26, %27 : vector<64x128xf32>
    %c0_20 = arith.constant 0 : index
    %c0_21 = arith.constant 0 : index
    %29 = vector.load %arg9[%c0_20, %c0_21] : memref<128x128xf32, #tpu.memory_space<vmem>>, vector<128x128xf32>
    %cst_22 = arith.constant dense<0.000000e+00> : vector<64x128xf32>
    %30 = tpu.matmul %28, %29, %cst_22 {dimension_numbers = #tpu.dot_dimension_numbers<[1], [0], [0], [1], [0, 0, 1, 1], [], []>} : vector<64x128xf32>, vector<128x128xf32>, vector<64x128xf32> -> vector<64x128xf32>
    %c0_23 = arith.constant 0 : index
    %c0_24 = arith.constant 0 : index
    %31 = vector.load %arg10[%c0_23, %c0_24] : memref<1x128xf32, #tpu.memory_space<vmem>>, vector<1x128xf32>
    %32 = vector.broadcast %31 : vector<1x128xf32> to vector<64x128xf32>
    %33 = arith.addf %30, %32 : vector<64x128xf32>
    %c0_25 = arith.constant 0 : index
    %c0_26 = arith.constant 0 : index
    %34 = vector.load %arg11[%c0_25, %c0_26] : memref<64x128xf32, #tpu.memory_space<vmem>>, vector<64x128xf32>
    tpu.vector_store %arg11[%c0_25, %c0_26], %33 {strides = array<i32>} : memref<64x128xf32, #tpu.memory_space<vmem>>, vector<64x128xf32>,
    return
  }
  func.func @transform_0(%arg0: i32) -> (i32, i32) {
    %c0_i32 = arith.constant 0 : i32
    %c0_i32_0 = arith.constant 0 : i32
    return %arg0, %c0_i32 : i32, i32
  }
  func.func @transform_1(%arg0: i32) -> (i32, i32) {
    %c0_i32 = arith.constant 0 : i32
    %c0_i32_0 = arith.constant 0 : i32
    %c0_i32_1 = arith.constant 0 : i32
    return %c0_i32, %c0_i32_0 : i32, i32
  }
  func.func @transform_2(%arg0: i32) -> (i32, i32) {
    %c0_i32 = arith.constant 0 : i32
    %c0_i32_0 = arith.constant 0 : i32
    %c0_i32_1 = arith.constant 0 : i32
    return %c0_i32, %c0_i32_0 : i32, i32
  }
  func.func @transform_3(%arg0: i32) -> (i32, i32) {
    %c0_i32 = arith.constant 0 : i32
    %c0_i32_0 = arith.constant 0 : i32
    %c0_i32_1 = arith.constant 0 : i32
    return %c0_i32, %c0_i32_0 : i32, i32
  }
  func.func @transform_4(%arg0: i32) -> (i32, i32) {
    %c0_i32 = arith.constant 0 : i32
    %c0_i32_0 = arith.constant 0 : i32
    %c0_i32_1 = arith.constant 0 : i32
    return %c0_i32, %c0_i32_0 : i32, i32
  }
  func.func @transform_5(%arg0: i32) -> (i32, i32) {
    %c0_i32 = arith.constant 0 : i32
    %c0_i32_0 = arith.constant 0 : i32
    %c0_i32_1 = arith.constant 0 : i32
    return %c0_i32, %c0_i32_0 : i32, i32
  }
  func.func @transform_6(%arg0: i32) -> (i32, i32) {
    %c0_i32 = arith.constant 0 : i32
    %c0_i32_0 = arith.constant 0 : i32
    %c0_i32_1 = arith.constant 0 : i32
    return %c0_i32, %c0_i32_0 : i32, i32
  }
  func.func @transform_7(%arg0: i32) -> (i32, i32) {
    %c0_i32 = arith.constant 0 : i32
    %c0_i32_0 = arith.constant 0 : i32
    %c0_i32_1 = arith.constant 0 : i32
    return %c0_i32, %c0_i32_0 : i32, i32
  }
  func.func @transform_8(%arg0: i32) -> (i32, i32) {
    %c0_i32 = arith.constant 0 : i32
    %c0_i32_0 = arith.constant 0 : i32
    %c0_i32_1 = arith.constant 0 : i32
    return %c0_i32, %c0_i32_0 : i32, i32
  }
  func.func @transform_9(%arg0: i32) -> (i32, i32) {
    %c0_i32 = arith.constant 0 : i32
    %c0_i32_0 = arith.constant 0 : i32
    %c0_i32_1 = arith.constant 0 : i32
    return %c0_i32, %c0_i32_0 : i32, i32
  }
  func.func @transform_10(%arg0: i32) -> (i32, i32) {
    %c0_i32 = arith.constant 0 : i32
    %c0_i32_0 = arith.constant 0 : i32
    return %arg0, %c0_i32 : i32, i32
  }
}

</mosaic_0001>

<llo_original>
// kernel: tpu_custom_call.1
$region0: #{tpu_custom_call.1}
  #allocation0 [shape = 'u32[]', space=smem, size = 0x4, offset = 0x4, fixed_abs, tag = 'smem constant byte address 0x4 - core index']
  #allocation1 [shape = 'u32[144,128]{1,0:T(1,128)}', space=vmem, size = 0x12000, scoped, tag = 'internal scratch']
  %s0 = inlined_call_operand.hbm [shape: f32[8,128], index: 0, kind: input, shape index: {}]
  %s1 = inlined_call_operand.hbm [shape: f32[8,128], index: 1, kind: input, shape index: {}]
  %s2 = inlined_call_operand.hbm [shape: f32[128,128], index: 2, kind: input, shape index: {}]
  %s3 = inlined_call_operand.vmem [shape: f32[1,128], index: 3, kind: input, shape index: {}]
  %s4 = inlined_call_operand.hbm [shape: f32[128,128], index: 4, kind: input, shape index: {}]
  %s5 = inlined_call_operand.vmem [shape: f32[1,128], index: 5, kind: input, shape index: {}]
  %s6 = inlined_call_operand.hbm [shape: f32[128,128], index: 6, kind: input, shape index: {}]
  %s7 = inlined_call_operand.vmem [shape: f32[1,128], index: 7, kind: input, shape index: {}]
  %s8 = inlined_call_operand.hbm [shape: f32[128,128], index: 8, kind: input, shape index: {}]
  %s9 = inlined_call_operand.vmem [shape: f32[1,128], index: 9, kind: input, shape index: {}]
  %s10 = inlined_call_operand.hbm [shape: f32[64,128], index: 10, kind: output, shape index: {}]
  %s11 = sld [smem:[#allocation0]]
  $region74: #{tpu_custom_call.1} parent=0
    _
  %s13 = ssub.s32 1, %s11
  %s14 = scalar_select 0, %s13, %s11
  $region1: #{tpu_custom_call.1} parent=0
    #allocation2 [shape = 'u8[4096]{0}', space=vmem, size = 0x1000, scoped, tag = 'input window, operand 0, single buffered']
    #allocation3 [shape = 's32[1]{0}', space=sflag, size = 0x4, scoped, tag = 'scoped memory for tpu_custom_call.1']
    #allocation4 [shape = 's32[1]{0}', space=sflag, size = 0x4, scoped, tag = 'scoped memory for tpu_custom_call.1']
    #allocation5 [shape = 'u8[4096]{0}', space=vmem, size = 0x1000, scoped, tag = 'input window, operand 1, single buffered']
    #allocation6 [shape = 's32[1]{0}', space=sflag, size = 0x4, scoped, tag = 'scoped memory for tpu_custom_call.1']
    #allocation7 [shape = 'u8[65536]{0}', space=vmem, size = 0x10000, scoped, tag = 'input window, operand 2, single buffered']
    #allocation8 [shape = 'u8[65536]{0}', space=vmem, size = 0x10000, scoped, tag = 'input window, operand 4, single buffered']
    #allocation9 [shape = 's32[1]{0}', space=sflag, size = 0x4, scoped, tag = 'scoped memory for tpu_custom_call.1']
    #allocation10 [shape = 'u8[65536]{0}', space=vmem, size = 0x10000, scoped, tag = 'input window, operand 6, single buffered']
    #allocation11 [shape = 'u8[65536]{0}', space=vmem, size = 0x10000, scoped, tag = 'input window, operand 8, single buffered']
    #allocation12 [shape = 's32[1]{0}', space=sflag, size = 0x4, scoped, tag = 'scoped memory for tpu_custom_call.1']
    #allocation13 [shape = 'u8[32768]{0}', space=vmem, size = 0x8000, scoped, tag = 'output window, operand 0, single buffered']
    %15 = vsyncpa [#allocation3], 0
    %16 = vsyncpa [#allocation6], 0
    %17 = vsyncpa [#allocation9], 0
    %18 = vsyncpa [#allocation12], 0
    %19 = vsyncpa [#allocation4], 0
    // Predicated region
    $region2: #{tpu_custom_call.1} parent=1 // pred_check
      _
    $region3: #{tpu_custom_call.1} parent=1 // pred_check_branch
      %21 = sbr.rel (0) target = $region5
    $region4: #{tpu_custom_call.1} parent=1 // pred_region
      %s23 = ssub.s32 128, 128
      %24 = vsyncadd [#allocation3], %s23
      %s26 = sshll.u32 [#allocation2], 4
      %s27 = int_to_ptr.vmem [resolvable:$true] %s26
      %29 = dma.hbm_to_vmem [thread:$0]  %s0, 128, %s27, [#allocation3]
    $region5: #{tpu_custom_call.1} parent=1 // pred_fallthru
      _
    // Predicated region
    $region6: #{tpu_custom_call.1} parent=1 // pred_check
      _
    $region7: #{tpu_custom_call.1} parent=1 // pred_check_branch
      %31 = sbr.rel (0) target = $region9
    $region8: #{tpu_custom_call.1} parent=1 // pred_region
      %s33 = ssub.s32 128, 128
      %34 = vsyncadd [#allocation6], %s33
      %s36 = sshll.u32 [#allocation5], 4
      %s37 = int_to_ptr.vmem [resolvable:$true] %s36
      %39 = dma.hbm_to_vmem [thread:$0]  %s1, 128, %s37, [#allocation6]
    $region9: #{tpu_custom_call.1} parent=1 // pred_fallthru
      _
    // Predicated region
    $region10: #{tpu_custom_call.1} parent=1 // pred_check
      _
    $region11: #{tpu_custom_call.1} parent=1 // pred_check_branch
      %41 = sbr.rel (0) target = $region13
    $region12: #{tpu_custom_call.1} parent=1 // pred_region
      %s43 = ssub.s32 2048, 2048
      %44 = vsyncadd [#allocation6], %s43
      %s45 = sshll.u32 [#allocation7], 4
      %s46 = int_to_ptr.vmem [resolvable:$true] %s45
      %51 = dma.hbm_to_vmem [thread:$0]  %s2, 2048, %s46, [#allocation6], 128, 128, 8
    $region13: #{tpu_custom_call.1} parent=1 // pred_fallthru
      _
    // Predicated region
    $region14: #{tpu_custom_call.1} parent=1 // pred_check
      _
    $region15: #{tpu_custom_call.1} parent=1 // pred_check_branch
      %53 = sbr.rel (0) target = $region17
    $region16: #{tpu_custom_call.1} parent=1 // pred_region
      _
    $region17: #{tpu_custom_call.1} parent=1 // pred_fallthru
      _
    // Predicated region
    $region18: #{tpu_custom_call.1} parent=1 // pred_check
      _
    $region19: #{tpu_custom_call.1} parent=1 // pred_check_branch
      %55 = sbr.rel (0) target = $region21
    $region20: #{tpu_custom_call.1} parent=1 // pred_region
      %s57 = ssub.s32 2048, 2048
      %58 = vsyncadd [#allocation9], %s57
      %s59 = sshll.u32 [#allocation8], 4
      %s60 = int_to_ptr.vmem [resolvable:$true] %s59
      %65 = dma.hbm_to_vmem [thread:$0]  %s4, 2048, %s60, [#allocation9], 128, 128, 8
    $region21: #{tpu_custom_call.1} parent=1 // pred_fallthru
      _
    // Predicated region
    $region22: #{tpu_custom_call.1} parent=1 // pred_check
      _
    $region23: #{tpu_custom_call.1} parent=1 // pred_check_branch
      %67 = sbr.rel (0) target = $region25
    $region24: #{tpu_custom_call.1} parent=1 // pred_region
      _
    $region25: #{tpu_custom_call.1} parent=1 // pred_fallthru
      _
    // Predicated region
    $region26: #{tpu_custom_call.1} parent=1 // pred_check
      _
    $region27: #{tpu_custom_call.1} parent=1 // pred_check_branch
      %69 = sbr.rel (0) target = $region29
    $region28: #{tpu_custom_call.1} parent=1 // pred_region
      %s71 = ssub.s32 2048, 2048
      %72 = vsyncadd [#allocation9], %s71
      %s73 = sshll.u32 [#allocation10], 4
      %s74 = int_to_ptr.vmem [resolvable:$true] %s73
      %79 = dma.hbm_to_vmem [thread:$0]  %s6, 2048, %s74, [#allocation9], 128, 128, 8
    $region29: #{tpu_custom_call.1} parent=1 // pred_fallthru
      _
    // Predicated region
    $region30: #{tpu_custom_call.1} parent=1 // pred_check
      _
    $region31: #{tpu_custom_call.1} parent=1 // pred_check_branch
      %81 = sbr.rel (0) target = $region33
    $region32: #{tpu_custom_call.1} parent=1 // pred_region
      _
    $region33: #{tpu_custom_call.1} parent=1 // pred_fallthru
      _
    // Predicated region
    $region34: #{tpu_custom_call.1} parent=1 // pred_check
      _
    $region35: #{tpu_custom_call.1} parent=1 // pred_check_branch
      %83 = sbr.rel (0) target = $region37
    $region36: #{tpu_custom_call.1} parent=1 // pred_region
      %s85 = ssub.s32 2048, 2048
      %86 = vsyncadd [#allocation12], %s85
      %s87 = sshll.u32 [#allocation11], 4
      %s88 = int_to_ptr.vmem [resolvable:$true] %s87
      %93 = dma.hbm_to_vmem [thread:$0]  %s8, 2048, %s88, [#allocation12], 128, 128, 8
    $region37: #{tpu_custom_call.1} parent=1 // pred_fallthru
      _
    // Predicated region
    $region38: #{tpu_custom_call.1} parent=1 // pred_check
      _
    $region39: #{tpu_custom_call.1} parent=1 // pred_check_branch
      %95 = sbr.rel (0) target = $region41
    $region40: #{tpu_custom_call.1} parent=1 // pred_region
      _
    $region41: #{tpu_custom_call.1} parent=1 // pred_fallthru
      _
    // Predicated region
    $region42: #{tpu_custom_call.1} parent=1 // pred_check
      _
    $region43: #{tpu_custom_call.1} parent=1 // pred_check_branch
      %97 = sbr.rel (0) target = $region45
    $region44: #{tpu_custom_call.1} parent=1 // pred_region
      %98 = dma.done [#allocation3], 128
    $region45: #{tpu_custom_call.1} parent=1 // pred_fallthru
      _
    // Predicated region
    $region46: #{tpu_custom_call.1} parent=1 // pred_check
      _
    $region47: #{tpu_custom_call.1} parent=1 // pred_check_branch
      %100 = sbr.rel (0) target = $region49
    $region48: #{tpu_custom_call.1} parent=1 // pred_region
      %101 = dma.done [#allocation6], 128
    $region49: #{tpu_custom_call.1} parent=1 // pred_fallthru
      _
    // Predicated region
    $region50: #{tpu_custom_call.1} parent=1 // pred_check
      _
    $region51: #{tpu_custom_call.1} parent=1 // pred_check_branch
      %103 = sbr.rel (0) target = $region53
    $region52: #{tpu_custom_call.1} parent=1 // pred_region
      %104 = dma.done [#allocation6], 2048
    $region53: #{tpu_custom_call.1} parent=1 // pred_fallthru
      _
    // Predicated region
    $region54: #{tpu_custom_call.1} parent=1 // pred_check
      _
    $region55: #{tpu_custom_call.1} parent=1 // pred_check_branch
      %106 = sbr.rel (0) target = $region57
    $region56: #{tpu_custom_call.1} parent=1 // pred_region
      %107 = dma.done [#allocation9], 2048
    $region57: #{tpu_custom_call.1} parent=1 // pred_fallthru
      _
    // Predicated region
    $region58: #{tpu_custom_call.1} parent=1 // pred_check
      _
    $region59: #{tpu_custom_call.1} parent=1 // pred_check_branch
      %109 = sbr.rel (0) target = $region61
    $region60: #{tpu_custom_call.1} parent=1 // pred_region
      %110 = dma.done [#allocation9], 2048
    $region61: #{tpu_custom_call.1} parent=1 // pred_fallthru
      _
    // Predicated region
    $region62: #{tpu_custom_call.1} parent=1 // pred_check
      _
    $region63: #{tpu_custom_call.1} parent=1 // pred_check_branch
      %112 = sbr.rel (0) target = $region65
    $region64: #{tpu_custom_call.1} parent=1 // pred_region
      %113 = dma.done [#allocation12], 2048
    $region65: #{tpu_custom_call.1} parent=1 // pred_fallthru
      _
    %v114 = vld [vmem:[#allocation2] sm:$0xff]
    %v115 = vld [vmem:[#allocation7] sm:$0xff]
    %v116 = vld [vmem:[#allocation7 + $0x8] sm:$0xff]
    %v117 = vld [vmem:[#allocation7 + $0x10] sm:$0xff]
    %v118 = vld [vmem:[#allocation7 + $0x18] sm:$0xff]
    %v119 = vld [vmem:[#allocation7 + $0x20] sm:$0xff]
    %v120 = vld [vmem:[#allocation7 + $0x28] sm:$0xff]
    %v121 = vld [vmem:[#allocation7 + $0x30] sm:$0xff]
    %v122 = vld [vmem:[#allocation7 + $0x38] sm:$0xff]
    %v123 = vld [vmem:[#allocation7 + $0x40] sm:$0xff]
    %v124 = vld [vmem:[#allocation7 + $0x48] sm:$0xff]
    %v125 = vld [vmem:[#allocation7 + $0x50] sm:$0xff]
    %v126 = vld [vmem:[#allocation7 + $0x58] sm:$0xff]
    %v127 = vld [vmem:[#allocation7 + $0x60] sm:$0xff]
    %v128 = vld [vmem:[#allocation7 + $0x68] sm:$0xff]
    %v129 = vld [vmem:[#allocation7 + $0x70] sm:$0xff]
    %v130 = vld [vmem:[#allocation7 + $0x78] sm:$0xff]
    %v131 = vld [vmem:[%s3] sm:$0x1]
    %v133 = vlaneseq
    %v134 = vshrl.u32 %v133, 7
    %v135 = vsub.s32 0, %v134
    %v136 = vrot.slane %v131, %v135
    %138 = vmatprep.subr.mxu0 0.0
    %139 = vmatpush1.msra.mxu0 %v115
    %140 = vmatprep.subr.mxu0 0.0
    %141 = vmatpush1.msra.mxu0 %v116
    %142 = vmatprep.subr.mxu0 0.0
    %143 = vmatpush1.msra.mxu0 %v117
    %144 = vmatprep.subr.mxu0 0.0
    %145 = vmatpush1.msra.mxu0 %v118
    %146 = vmatprep.subr.mxu0 0.0
    %147 = vmatpush1.msra.mxu0 %v119
    %148 = vmatprep.subr.mxu0 0.0
    %149 = vmatpush1.msra.mxu0 %v120
    %150 = vmatprep.subr.mxu0 0.0
    %151 = vmatpush1.msra.mxu0 %v121
    %152 = vmatprep.subr.mxu0 0.0
    %153 = vmatpush1.msra.mxu0 %v122
    %154 = vmatprep.subr.mxu0 0.0
    %155 = vmatpush1.msra.mxu0 %v123
    %156 = vmatprep.subr.mxu0 0.0
    %157 = vmatpush1.msra.mxu0 %v124
    %158 = vmatprep.subr.mxu0 0.0
    %159 = vmatpush1.msra.mxu0 %v125
    %160 = vmatprep.subr.mxu0 0.0
    %161 = vmatpush1.msra.mxu0 %v126
    %162 = vmatprep.subr.mxu0 0.0
    %163 = vmatpush1.msra.mxu0 %v127
    %164 = vmatprep.subr.mxu0 0.0
    %165 = vmatpush1.msra.mxu0 %v128
    %166 = vmatprep.subr.mxu0 0.0
    %167 = vmatpush1.msra.mxu0 %v129
    %168 = vmatprep.subr.mxu0 0.0
    %169 = vmatpush1.msra.mxu0 %v130
    %170 = vmatprep.subr.mxu0 0.0
    %171 = vmatpush1.msra.mxu0 0.0
    %172 = vmatprep.subr.mxu0 0.0
    %173 = vmatpush1.msra.mxu0 0.0
    %174 = vmatprep.subr.mxu0 0.0
    %175 = vmatpush1.msra.mxu0 0.0
    %176 = vmatprep.subr.mxu0 0.0
    %177 = vmatpush1.msra.mxu0 0.0
    %178 = vmatprep.subr.mxu0 0.0
    %179 = vmatpush1.msra.mxu0 0.0
    %180 = vmatprep.subr.mxu0 0.0
    %181 = vmatpush1.msra.mxu0 0.0
    %182 = vmatprep.subr.mxu0 0.0
    %183 = vmatpush1.msra.mxu0 0.0
    %184 = vmatprep.subr.mxu0 0.0
    %185 = vmatpush1.msra.mxu0 0.0
    %186 = vmatprep.subr.mxu0 0.0
    %187 = vmatpush1.msra.mxu0 0.0
    %188 = vmatprep.subr.mxu0 0.0
    %189 = vmatpush1.msra.mxu0 0.0
    %190 = vmatprep.subr.mxu0 0.0
    %191 = vmatpush1.msra.mxu0 0.0
    %192 = vmatprep.subr.mxu0 0.0
    %193 = vmatpush1.msra.mxu0 0.0
    %194 = vmatprep.subr.mxu0 0.0
    %195 = vmatpush1.msra.mxu0 0.0
    %196 = vmatprep.subr.mxu0 0.0
    %197 = vmatpush1.msra.mxu0 0.0
    %198 = vmatprep.subr.mxu0 0.0
    %199 = vmatpush1.msra.mxu0 0.0
    %200 = vmatprep.subr.mxu0 0.0
    %201 = vmatpush1.msra.mxu0 0.0
    %202 = vmatprep.mubr.f32.mxu0 0.0
    %203 = vmatmul.mubr.f32.gmra.mrb[0].mxu0 %v114
    %v204 = vpop.f32.mrb[0].mxu0
    %v205 = vadd.f32 %v136, %v204
    %v206 = vpop.f32.mrb[0].mxu0
    %207 = vdwg.mxu0
    %v208 = vmax.f32 %v205, 0.0
    %v209 = vld [vmem:[#allocation8] sm:$0xff]
    %v210 = vld [vmem:[#allocation8 + $0x8] sm:$0xff]
    %v211 = vld [vmem:[#allocation8 + $0x10] sm:$0xff]
    %v212 = vld [vmem:[#allocation8 + $0x18] sm:$0xff]
    %v213 = vld [vmem:[#allocation8 + $0x20] sm:$0xff]
    %v214 = vld [vmem:[#allocation8 + $0x28] sm:$0xff]
    %v215 = vld [vmem:[#allocation8 + $0x30] sm:$0xff]
    %v216 = vld [vmem:[#allocation8 + $0x38] sm:$0xff]
    %v217 = vld [vmem:[#allocation8 + $0x40] sm:$0xff]
    %v218 = vld [vmem:[#allocation8 + $0x48] sm:$0xff]
    %v219 = vld [vmem:[#allocation8 + $0x50] sm:$0xff]
    %v220 = vld [vmem:[#allocation8 + $0x58] sm:$0xff]
    %v221 = vld [vmem:[#allocation8 + $0x60] sm:$0xff]
    %v222 = vld [vmem:[#allocation8 + $0x68] sm:$0xff]
    %v223 = vld [vmem:[#allocation8 + $0x70] sm:$0xff]
    %v224 = vld [vmem:[#allocation8 + $0x78] sm:$0xff]
    %v225 = vld [vmem:[%s5] sm:$0x1]
    %v227 = vlaneseq
    %v228 = vshrl.u32 %v227, 7
    %v229 = vsub.s32 0, %v228
    %v230 = vrot.slane %v225, %v229
    %232 = vmatprep.subr.mxu0 0.0
    %233 = vmatpush1.msra.mxu0 %v209
    %234 = vmatprep.subr.mxu0 0.0
    %235 = vmatpush1.msra.mxu0 %v210
    %236 = vmatprep.subr.mxu0 0.0
    %237 = vmatpush1.msra.mxu0 %v211
    %238 = vmatprep.subr.mxu0 0.0
    %239 = vmatpush1.msra.mxu0 %v212
    %240 = vmatprep.subr.mxu0 0.0
    %241 = vmatpush1.msra.mxu0 %v213
    %242 = vmatprep.subr.mxu0 0.0
    %243 = vmatpush1.msra.mxu0 %v214
    %244 = vmatprep.subr.mxu0 0.0
    %245 = vmatpush1.msra.mxu0 %v215
    %246 = vmatprep.subr.mxu0 0.0
    %247 = vmatpush1.msra.mxu0 %v216
    %248 = vmatprep.subr.mxu0 0.0
    %249 = vmatpush1.msra.mxu0 %v217
    %250 = vmatprep.subr.mxu0 0.0
    %251 = vmatpush1.msra.mxu0 %v218
    %252 = vmatprep.subr.mxu0 0.0
    %253 = vmatpush1.msra.mxu0 %v219
    %254 = vmatprep.subr.mxu0 0.0
    %255 = vmatpush1.msra.mxu0 %v220
    %256 = vmatprep.subr.mxu0 0.0
    %257 = vmatpush1.msra.mxu0 %v221
    %258 = vmatprep.subr.mxu0 0.0
    %259 = vmatpush1.msra.mxu0 %v222
    %260 = vmatprep.subr.mxu0 0.0
    %261 = vmatpush1.msra.mxu0 %v223
    %262 = vmatprep.subr.mxu0 0.0
    %263 = vmatpush1.msra.mxu0 %v224
    %264 = vmatprep.subr.mxu0 0.0
    %265 = vmatpush1.msra.mxu0 0.0
    %266 = vmatprep.subr.mxu0 0.0
    %267 = vmatpush1.msra.mxu0 0.0
    %268 = vmatprep.subr.mxu0 0.0
    %269 = vmatpush1.msra.mxu0 0.0
    %270 = vmatprep.subr.mxu0 0.0
    %271 = vmatpush1.msra.mxu0 0.0
    %272 = vmatprep.subr.mxu0 0.0
    %273 = vmatpush1.msra.mxu0 0.0
    %274 = vmatprep.subr.mxu0 0.0
    %275 = vmatpush1.msra.mxu0 0.0
    %276 = vmatprep.subr.mxu0 0.0
    %277 = vmatpush1.msra.mxu0 0.0
    %278 = vmatprep.subr.mxu0 0.0
    %279 = vmatpush1.msra.mxu0 0.0
    %280 = vmatprep.subr.mxu0 0.0
    %281 = vmatpush1.msra.mxu0 0.0
    %282 = vmatprep.subr.mxu0 0.0
    %283 = vmatpush1.msra.mxu0 0.0
    %284 = vmatprep.subr.mxu0 0.0
    %285 = vmatpush1.msra.mxu0 0.0
    %286 = vmatprep.subr.mxu0 0.0
    %287 = vmatpush1.msra.mxu0 0.0
    %288 = vmatprep.subr.mxu0 0.0
    %289 = vmatpush1.msra.mxu0 0.0
    %290 = vmatprep.subr.mxu0 0.0
    %291 = vmatpush1.msra.mxu0 0.0
    %292 = vmatprep.subr.mxu0 0.0
    %293 = vmatpush1.msra.mxu0 0.0
    %294 = vmatprep.subr.mxu0 0.0
    %295 = vmatpush1.msra.mxu0 0.0
    %296 = vmatprep.mubr.f32.mxu0 0.0
    %297 = vmatmul.mubr.f32.gmra.mrb[0].mxu0 %v208
    %v298 = vpop.f32.mrb[0].mxu0
    %v299 = vadd.f32 %v230, %v298
    %v300 = vpop.f32.mrb[0].mxu0
    %301 = vdwg.mxu0
    %v302 = vmax.f32 %v299, 0.0
    %v303 = vld [vmem:[#allocation5] sm:$0xff]
    %v305 = vcombine.high %v302, %v302
    %v307 = vunpack.c.l.s4 1966171168
    %v308 = vunpack.c.0.s8 %v307
    %v309 = vlaneseq
    %v310 = vshrl.u32 %v309, 7
    %v311 = vsub.s32 %v308, %v310
    %v312 = vrot.slane %v302, %v311
    %v314 = vunpack.c.l.s4 1966171168
    %v315 = vunpack.c.0.s8 %v314
    %v316 = vlaneseq
    %v317 = vshrl.u32 %v316, 7
    %v318 = vsub.s32 %v315, %v317
    %v319 = vrot.slane %v305, %v318
    %v320 = vcombine.high %v312, %v312
    %v321 = vcombine.high %v319, %v319
    %v323 = vunpack.c.l.s4 1966171168
    %v324 = vunpack.c.0.s8 %v323
    %v325 = vlaneseq
    %v326 = vshrl.u32 %v325, 7
    %v327 = vsub.s32 %v324, %v326
    %v328 = vrot.slane %v312, %v327
    %v330 = vunpack.c.l.s4 1966171168
    %v331 = vunpack.c.0.s8 %v330
    %v332 = vlaneseq
    %v333 = vshrl.u32 %v332, 7
    %v334 = vsub.s32 %v331, %v333
    %v335 = vrot.slane %v319, %v334
    %v337 = vunpack.c.l.s4 1966171168
    %v338 = vunpack.c.0.s8 %v337
    %v339 = vlaneseq
    %v340 = vshrl.u32 %v339, 7
    %v341 = vsub.s32 %v338, %v340
    %v342 = vrot.slane %v320, %v341
    %v344 = vunpack.c.l.s4 1966171168
    %v345 = vunpack.c.0.s8 %v344
    %v346 = vlaneseq
    %v347 = vshrl.u32 %v346, 7
    %v348 = vsub.s32 %v345, %v347
    %v349 = vrot.slane %v321, %v348
    %v350 = vcombine.high %v328, %v328
    %v351 = vcombine.high %v335, %v335
    %v352 = vcombine.high %v342, %v342
    %v353 = vcombine.high %v349, %v349
    %v354 = vlaneseq
    %v355 = vshrl.u32 %v354, 7
    %v356 = vsub.s32 0, %v355
    %v357 = vrot.slane %v328, %v356
    %v358 = vlaneseq
    %v359 = vshrl.u32 %v358, 7
    %v360 = vsub.s32 0, %v359
    %v361 = vrot.slane %v342, %v360
    %v362 = vlaneseq
    %v363 = vshrl.u32 %v362, 7
    %v364 = vsub.s32 0, %v363
    %v365 = vrot.slane %v350, %v364
    %v366 = vlaneseq
    %v367 = vshrl.u32 %v366, 7
    %v368 = vsub.s32 0, %v367
    %v369 = vrot.slane %v352, %v368
    %v370 = vlaneseq
    %v371 = vshrl.u32 %v370, 7
    %v372 = vsub.s32 0, %v371
    %v373 = vrot.slane %v335, %v372
    %v374 = vlaneseq
    %v375 = vshrl.u32 %v374, 7
    %v376 = vsub.s32 0, %v375
    %v377 = vrot.slane %v349, %v376
    %v378 = vlaneseq
    %v379 = vshrl.u32 %v378, 7
    %v380 = vsub.s32 0, %v379
    %v381 = vrot.slane %v351, %v380
    %v382 = vlaneseq
    %v383 = vshrl.u32 %v382, 7
    %v384 = vsub.s32 0, %v383
    %v385 = vrot.slane %v353, %v384
    %v394 = vmul.f32 %v357, %v303
    %v395 = vmul.f32 %v361, %v303
    %v396 = vmul.f32 %v365, %v303
    %v397 = vmul.f32 %v369, %v303
    %v398 = vmul.f32 %v373, %v303
    %v399 = vmul.f32 %v377, %v303
    %v400 = vmul.f32 %v381, %v303
    %v401 = vmul.f32 %v385, %v303
    %v402 = vld [vmem:[#allocation10] sm:$0xff]
    %v403 = vld [vmem:[#allocation10 + $0x8] sm:$0xff]
    %v404 = vld [vmem:[#allocation10 + $0x10] sm:$0xff]
    %v405 = vld [vmem:[#allocation10 + $0x18] sm:$0xff]
    %v406 = vld [vmem:[#allocation10 + $0x20] sm:$0xff]
    %v407 = vld [vmem:[#allocation10 + $0x28] sm:$0xff]
    %v408 = vld [vmem:[#allocation10 + $0x30] sm:$0xff]
    %v409 = vld [vmem:[#allocation10 + $0x38] sm:$0xff]
    %v410 = vld [vmem:[#allocation10 + $0x40] sm:$0xff]
    %v411 = vld [vmem:[#allocation10 + $0x48] sm:$0xff]
    %v412 = vld [vmem:[#allocation10 + $0x50] sm:$0xff]
    %v413 = vld [vmem:[#allocation10 + $0x58] sm:$0xff]
    %v414 = vld [vmem:[#allocation10 + $0x60] sm:$0xff]
    %v415 = vld [vmem:[#allocation10 + $0x68] sm:$0xff]
    %v416 = vld [vmem:[#allocation10 + $0x70] sm:$0xff]
    %v417 = vld [vmem:[#allocation10 + $0x78] sm:$0xff]
    %v418 = vld [vmem:[%s7] sm:$0x1]
    %v420 = vlaneseq
    %v421 = vshrl.u32 %v420, 7
    %v422 = vsub.s32 0, %v421
    %v423 = vrot.slane %v418, %v422
    %425 = vmatprep.subr.mxu0 0.0
    %426 = vmatpush1.msra.mxu0 %v402
    %427 = vmatprep.subr.mxu0 0.0
    %428 = vmatpush1.msra.mxu0 %v403
    %429 = vmatprep.subr.mxu0 0.0
    %430 = vmatpush1.msra.mxu0 %v404
    %431 = vmatprep.subr.mxu0 0.0
    %432 = vmatpush1.msra.mxu0 %v405
    %433 = vmatprep.subr.mxu0 0.0
    %434 = vmatpush1.msra.mxu0 %v406
    %435 = vmatprep.subr.mxu0 0.0
    %436 = vmatpush1.msra.mxu0 %v407
    %437 = vmatprep.subr.mxu0 0.0
    %438 = vmatpush1.msra.mxu0 %v408
    %439 = vmatprep.subr.mxu0 0.0
    %440 = vmatpush1.msra.mxu0 %v409
    %441 = vmatprep.subr.mxu0 0.0
    %442 = vmatpush1.msra.mxu0 %v410
    %443 = vmatprep.subr.mxu0 0.0
    %444 = vmatpush1.msra.mxu0 %v411
    %445 = vmatprep.subr.mxu0 0.0
    %446 = vmatpush1.msra.mxu0 %v412
    %447 = vmatprep.subr.mxu0 0.0
    %448 = vmatpush1.msra.mxu0 %v413
    %449 = vmatprep.subr.mxu0 0.0
    %450 = vmatpush1.msra.mxu0 %v414
    %451 = vmatprep.subr.mxu0 0.0
    %452 = vmatpush1.msra.mxu0 %v415
    %453 = vmatprep.subr.mxu0 0.0
    %454 = vmatpush1.msra.mxu0 %v416
    %455 = vmatprep.subr.mxu0 0.0
    %456 = vmatpush1.msra.mxu0 %v417
    %457 = vmatprep.subr.mxu0 0.0
    %458 = vmatpush1.msra.mxu0 0.0
    %459 = vmatprep.subr.mxu0 0.0
    %460 = vmatpush1.msra.mxu0 0.0
    %461 = vmatprep.subr.mxu0 0.0
    %462 = vmatpush1.msra.mxu0 0.0
    %463 = vmatprep.subr.mxu0 0.0
    %464 = vmatpush1.msra.mxu0 0.0
    %465 = vmatprep.subr.mxu0 0.0
    %466 = vmatpush1.msra.mxu0 0.0
    %467 = vmatprep.subr.mxu0 0.0
    %468 = vmatpush1.msra.mxu0 0.0
    %469 = vmatprep.subr.mxu0 0.0
    %470 = vmatpush1.msra.mxu0 0.0
    %471 = vmatprep.subr.mxu0 0.0
    %472 = vmatpush1.msra.mxu0 0.0
    %473 = vmatprep.subr.mxu0 0.0
    %474 = vmatpush1.msra.mxu0 0.0
    %475 = vmatprep.subr.mxu0 0.0
    %476 = vmatpush1.msra.mxu0 0.0
    %477 = vmatprep.subr.mxu0 0.0
    %478 = vmatpush1.msra.mxu0 0.0
    %479 = vmatprep.subr.mxu0 0.0
    %480 = vmatpush1.msra.mxu0 0.0
    %481 = vmatprep.subr.mxu0 0.0
    %482 = vmatpush1.msra.mxu0 0.0
    %483 = vmatprep.subr.mxu0 0.0
    %484 = vmatpush1.msra.mxu0 0.0
    %485 = vmatprep.subr.mxu0 0.0
    %486 = vmatpush1.msra.mxu0 0.0
    %487 = vmatprep.subr.mxu0 0.0
    %488 = vmatpush1.msra.mxu0 0.0
    %489 = vmatprep.mubr.f32.mxu0 0.0
    %490 = vmatmul.mubr.f32.gmra.mrb[0].mxu0 %v394
    %v491 = vpop.f32.mrb[0].mxu0
    %v492 = vadd.f32 %v423, %v491
    %v493 = vpop.f32.mrb[0].mxu0
    %494 = vmatprep.mubr.f32.mxu0 0.0
    %495 = vmatmul.mubr.f32.gmra.mrb[0].mxu0 %v395
    %v496 = vpop.f32.mrb[0].mxu0
    %v497 = vadd.f32 %v423, %v496
    %v498 = vpop.f32.mrb[0].mxu0
    %499 = vmatprep.mubr.f32.mxu0 0.0
    %500 = vmatmul.mubr.f32.gmra.mrb[0].mxu0 %v396
    %v501 = vpop.f32.mrb[0].mxu0
    %v502 = vadd.f32 %v423, %v501
    %v503 = vpop.f32.mrb[0].mxu0
    %504 = vmatprep.mubr.f32.mxu0 0.0
    %505 = vmatmul.mubr.f32.gmra.mrb[0].mxu0 %v397
    %v506 = vpop.f32.mrb[0].mxu0
    %v507 = vadd.f32 %v423, %v506
    %v508 = vpop.f32.mrb[0].mxu0
    %509 = vmatprep.mubr.f32.mxu0 0.0
    %510 = vmatmul.mubr.f32.gmra.mrb[0].mxu0 %v398
    %v511 = vpop.f32.mrb[0].mxu0
    %v512 = vadd.f32 %v423, %v511
    %v513 = vpop.f32.mrb[0].mxu0
    %514 = vmatprep.mubr.f32.mxu0 0.0
    %515 = vmatmul.mubr.f32.gmra.mrb[0].mxu0 %v399
    %v516 = vpop.f32.mrb[0].mxu0
    %v517 = vadd.f32 %v423, %v516
    %v518 = vpop.f32.mrb[0].mxu0
    %519 = vmatprep.mubr.f32.mxu0 0.0
    %520 = vmatmul.mubr.f32.gmra.mrb[0].mxu0 %v400
    %v521 = vpop.f32.mrb[0].mxu0
    %v522 = vadd.f32 %v423, %v521
    %v523 = vpop.f32.mrb[0].mxu0
    %524 = vmatprep.mubr.f32.mxu0 0.0
    %525 = vmatmul.mubr.f32.gmra.mrb[0].mxu0 %v401
    %v526 = vpop.f32.mrb[0].mxu0
    %v527 = vadd.f32 %v423, %v526
    %v528 = vpop.f32.mrb[0].mxu0
    %529 = vdwg.mxu0
    %v530 = vmax.f32 %v492, 0.0
    %v531 = vmax.f32 %v497, 0.0
    %v532 = vmax.f32 %v502, 0.0
    %v533 = vmax.f32 %v507, 0.0
    %v534 = vmax.f32 %v512, 0.0
    %v535 = vmax.f32 %v517, 0.0
    %v536 = vmax.f32 %v522, 0.0
    %v537 = vmax.f32 %v527, 0.0
    %v538 = vld [vmem:[#allocation11] sm:$0xff]
    %v539 = vld [vmem:[#allocation11 + $0x8] sm:$0xff]
    %v540 = vld [vmem:[#allocation11 + $0x10] sm:$0xff]
    %v541 = vld [vmem:[#allocation11 + $0x18] sm:$0xff]
    %v542 = vld [vmem:[#allocation11 + $0x20] sm:$0xff]
    %v543 = vld [vmem:[#allocation11 + $0x28] sm:$0xff]
    %v544 = vld [vmem:[#allocation11 + $0x30] sm:$0xff]
    %v545 = vld [vmem:[#allocation11 + $0x38] sm:$0xff]
    %v546 = vld [vmem:[#allocation11 + $0x40] sm:$0xff]
    %v547 = vld [vmem:[#allocation11 + $0x48] sm:$0xff]
    %v548 = vld [vmem:[#allocation11 + $0x50] sm:$0xff]
    %v549 = vld [vmem:[#allocation11 + $0x58] sm:$0xff]
    %v550 = vld [vmem:[#allocation11 + $0x60] sm:$0xff]
    %v551 = vld [vmem:[#allocation11 + $0x68] sm:$0xff]
    %v552 = vld [vmem:[#allocation11 + $0x70] sm:$0xff]
    %v553 = vld [vmem:[#allocation11 + $0x78] sm:$0xff]
    %v554 = vld [vmem:[%s9] sm:$0x1]
    %v556 = vlaneseq
    %v557 = vshrl.u32 %v556, 7
    %v558 = vsub.s32 0, %v557
    %v559 = vrot.slane %v554, %v558
    %561 = vmatprep.subr.mxu0 0.0
    %562 = vmatpush1.msra.mxu0 %v538
    %563 = vmatprep.subr.mxu0 0.0
    %564 = vmatpush1.msra.mxu0 %v539
    %565 = vmatprep.subr.mxu0 0.0
    %566 = vmatpush1.msra.mxu0 %v540
    %567 = vmatprep.subr.mxu0 0.0
    %568 = vmatpush1.msra.mxu0 %v541
    %569 = vmatprep.subr.mxu0 0.0
    %570 = vmatpush1.msra.mxu0 %v542
    %571 = vmatprep.subr.mxu0 0.0
    %572 = vmatpush1.msra.mxu0 %v543
    %573 = vmatprep.subr.mxu0 0.0
    %574 = vmatpush1.msra.mxu0 %v544
    %575 = vmatprep.subr.mxu0 0.0
    %576 = vmatpush1.msra.mxu0 %v545
    %577 = vmatprep.subr.mxu0 0.0
    %578 = vmatpush1.msra.mxu0 %v546
    %579 = vmatprep.subr.mxu0 0.0
    %580 = vmatpush1.msra.mxu0 %v547
    %581 = vmatprep.subr.mxu0 0.0
    %582 = vmatpush1.msra.mxu0 %v548
    %583 = vmatprep.subr.mxu0 0.0
    %584 = vmatpush1.msra.mxu0 %v549
    %585 = vmatprep.subr.mxu0 0.0
    %586 = vmatpush1.msra.mxu0 %v550
    %587 = vmatprep.subr.mxu0 0.0
    %588 = vmatpush1.msra.mxu0 %v551
    %589 = vmatprep.subr.mxu0 0.0
    %590 = vmatpush1.msra.mxu0 %v552
    %591 = vmatprep.subr.mxu0 0.0
    %592 = vmatpush1.msra.mxu0 %v553
    %593 = vmatprep.subr.mxu0 0.0
    %594 = vmatpush1.msra.mxu0 0.0
    %595 = vmatprep.subr.mxu0 0.0
    %596 = vmatpush1.msra.mxu0 0.0
    %597 = vmatprep.subr.mxu0 0.0
    %598 = vmatpush1.msra.mxu0 0.0
    %599 = vmatprep.subr.mxu0 0.0
    %600 = vmatpush1.msra.mxu0 0.0
    %601 = vmatprep.subr.mxu0 0.0
    %602 = vmatpush1.msra.mxu0 0.0
    %603 = vmatprep.subr.mxu0 0.0
    %604 = vmatpush1.msra.mxu0 0.0
    %605 = vmatprep.subr.mxu0 0.0
    %606 = vmatpush1.msra.mxu0 0.0
    %607 = vmatprep.subr.mxu0 0.0
    %608 = vmatpush1.msra.mxu0 0.0
    %609 = vmatprep.subr.mxu0 0.0
    %610 = vmatpush1.msra.mxu0 0.0
    %611 = vmatprep.subr.mxu0 0.0
    %612 = vmatpush1.msra.mxu0 0.0
    %613 = vmatprep.subr.mxu0 0.0
    %614 = vmatpush1.msra.mxu0 0.0
    %615 = vmatprep.subr.mxu0 0.0
    %616 = vmatpush1.msra.mxu0 0.0
    %617 = vmatprep.subr.mxu0 0.0
    %618 = vmatpush1.msra.mxu0 0.0
    %619 = vmatprep.subr.mxu0 0.0
    %620 = vmatpush1.msra.mxu0 0.0
    %621 = vmatprep.subr.mxu0 0.0
    %622 = vmatpush1.msra.mxu0 0.0
    %623 = vmatprep.subr.mxu0 0.0
    %624 = vmatpush1.msra.mxu0 0.0
    %625 = vmatprep.mubr.f32.mxu0 0.0
    %626 = vmatmul.mubr.f32.gmra.mrb[0].mxu0 %v530
    %v627 = vpop.f32.mrb[0].mxu0
    %v628 = vadd.f32 %v559, %v627
    %v629 = vpop.f32.mrb[0].mxu0
    %630 = vmatprep.mubr.f32.mxu0 0.0
    %631 = vmatmul.mubr.f32.gmra.mrb[0].mxu0 %v531
    %v632 = vpop.f32.mrb[0].mxu0
    %v633 = vadd.f32 %v559, %v632
    %v634 = vpop.f32.mrb[0].mxu0
    %635 = vmatprep.mubr.f32.mxu0 0.0
    %636 = vmatmul.mubr.f32.gmra.mrb[0].mxu0 %v532
    %v637 = vpop.f32.mrb[0].mxu0
    %v638 = vadd.f32 %v559, %v637
    %v639 = vpop.f32.mrb[0].mxu0
    %640 = vmatprep.mubr.f32.mxu0 0.0
    %641 = vmatmul.mubr.f32.gmra.mrb[0].mxu0 %v533
    %v642 = vpop.f32.mrb[0].mxu0
    %v643 = vadd.f32 %v559, %v642
    %v644 = vpop.f32.mrb[0].mxu0
    %645 = vmatprep.mubr.f32.mxu0 0.0
    %646 = vmatmul.mubr.f32.gmra.mrb[0].mxu0 %v534
    %v647 = vpop.f32.mrb[0].mxu0
    %v648 = vadd.f32 %v559, %v647
    %v649 = vpop.f32.mrb[0].mxu0
    %650 = vmatprep.mubr.f32.mxu0 0.0
    %651 = vmatmul.mubr.f32.gmra.mrb[0].mxu0 %v535
    %v652 = vpop.f32.mrb[0].mxu0
    %v653 = vadd.f32 %v559, %v652
    %v654 = vpop.f32.mrb[0].mxu0
    %655 = vmatprep.mubr.f32.mxu0 0.0
    %656 = vmatmul.mubr.f32.gmra.mrb[0].mxu0 %v536
    %v657 = vpop.f32.mrb[0].mxu0
    %v658 = vadd.f32 %v559, %v657
    %v659 = vpop.f32.mrb[0].mxu0
    %660 = vmatprep.mubr.f32.mxu0 0.0
    %661 = vmatmul.mubr.f32.gmra.mrb[0].mxu0 %v537
    %v662 = vpop.f32.mrb[0].mxu0
    %v663 = vadd.f32 %v559, %v662
    %v664 = vpop.f32.mrb[0].mxu0
    %665 = vdwg.mxu0
    %666 = vst [vmem:[#allocation13] sm:$0xff] %v628
    %667 = vst [vmem:[#allocation13 + $0x8] sm:$0xff] %v633
    %668 = vst [vmem:[#allocation13 + $0x10] sm:$0xff] %v638
    %669 = vst [vmem:[#allocation13 + $0x18] sm:$0xff] %v643
    %670 = vst [vmem:[#allocation13 + $0x20] sm:$0xff] %v648
    %671 = vst [vmem:[#allocation13 + $0x28] sm:$0xff] %v653
    %672 = vst [vmem:[#allocation13 + $0x30] sm:$0xff] %v658
    %673 = vst [vmem:[#allocation13 + $0x38] sm:$0xff] %v663
    // Predicated region
    $region66: #{tpu_custom_call.1} parent=1 // pred_check
      _
    $region67: #{tpu_custom_call.1} parent=1 // pred_check_branch
      %675 = sbr.rel (0) target = $region69
    $region68: #{tpu_custom_call.1} parent=1 // pred_region
      %s677 = ssub.s32 1024, 1024
      %678 = vsyncadd [#allocation4], %s677
      %s679 = sshll.u32 [#allocation13], 4
      %s680 = int_to_ptr.vmem [resolvable:$true] %s679
      %685 = dma.vmem_to_hbm [thread:$0]  %s680, 1024, %s10, [#allocation4], 128, 128, 8
    $region69: #{tpu_custom_call.1} parent=1 // pred_fallthru
      _
    // Predicated region
    $region70: #{tpu_custom_call.1} parent=1 // pred_check
      _
    $region71: #{tpu_custom_call.1} parent=1 // pred_check_branch
      %687 = sbr.rel (0) target = $region73
    $region72: #{tpu_custom_call.1} parent=1 // pred_region
      %688 = dma.done [#allocation4], 1024
    $region73: #{tpu_custom_call.1} parent=1 // pred_fallthru
      _
    %689 = vsyncpa [#allocation3], 1
    %690 = vsyncpa [#allocation6], 1
    %691 = vsyncpa [#allocation9], 1
    %692 = vsyncpa [#allocation12], 1
    %693 = vsyncpa [#allocation4], 1

</llo_original>
